<compile_context>
chip_gen: v6e
topology: v6e:2x2x1
jax: 0.10.0
libtpu: 0.0.40
codegen_flags: <defaults>
</compile_context>

<pallas_src>
import math

import jax
import jax.numpy as jnp
from jax.experimental import pallas as pl
from jax.experimental.pallas import tpu as pltpu

HIDDEN = 64        # logical hidden size (nn.Linear(..., 64))
HIDDEN_PAD = 128   # hidden padded to a full 128-lane vreg


def _round_up(x, m):
    return (x + m - 1) // m * m


def _device_kind():
    try:
        return jax.devices()[0].device_kind.lower()
    except Exception:
        return ""


def _default_weight_dtype():
    kind = _device_kind()
    # v5e and older: no bf16 VPU datapath -> keep f32 weights (no activation casts).
    # v6e/v7x: native bf16 MXU/VPU -> bf16 weights are free; accumulation stays f32.
    if any(v in kind for v in ("v2", "v3", "v4", "v5")):
        return jnp.float32
    return jnp.bfloat16


def _default_dim_semantics():
    # v7x has 2 TensorCores/chip: CORE_PARALLEL is what reliably shards the
    # batch grid across them.  "parallel" is sufficient on 1-TC chips.
    if "v7" in _device_kind():
        return (pltpu.CORE_PARALLEL,)
    return ("parallel",)


def _mlp_kernel(x_ref, w1_ref, w2_ref, w3t_ref, b12_ref, b3t_ref, ot_ref):
    """Fused 3-layer MLP on one batch tile.

    Layers 1/2 run batch-major: h = relu(x @ W + b)           -> (tb, 128)
    Layer 3 runs transposed:    out^T = W3^T @ h2^T + b3^T    -> (out_pad, tb)
    so the output store is lane-dense with lanes = batch.
    """
    wdt = w1_ref.dtype                          # f32, or bf16 on v6e/v7x
    x = x_ref[...].astype(wdt)                  # (tb, in)

    b12 = b12_ref[...]                          # (8, 128) f32 bias slab
    b1 = b12[0:1, :]
    b2 = b12[1:2, :]

    h1 = jnp.dot(x, w1_ref[...], preferred_element_type=jnp.float32) + b1
    h1 = jnp.maximum(h1, 0.0)                   # (tb, 128) f32

    h2 = jnp.dot(h1.astype(wdt), w2_ref[...],
                 preferred_element_type=jnp.float32) + b2
    h2 = jnp.maximum(h2, 0.0)                   # (tb, 128) f32

    out_t = jnp.dot(w3t_ref[...], h2.astype(wdt).T,
                    preferred_element_type=jnp.float32)       # (out_pad, tb)
    ot_ref[...] = (out_t + b3t_ref[...]).astype(ot_ref.dtype)


def init_params(key, input_size, output_size):
    """torch.nn.Linear-style init: U(-1/sqrt(fan_in), 1/sqrt(fan_in)).
    Weights stored as (in, out) so the math is x @ W + b."""
    def linear(k, fan_in, fan_out):
        kw, kb = jax.random.split(k)
        bound = 1.0 / math.sqrt(fan_in)
        w = jax.random.uniform(kw, (fan_in, fan_out), jnp.float32, -bound, bound)
        b = jax.random.uniform(kb, (1, fan_out), jnp.float32, -bound, bound)
        return w, b

    k1, k2, k3 = jax.random.split(key, 3)
    w1, b1 = linear(k1, input_size, HIDDEN)
    w2, b2 = linear(k2, HIDDEN, HIDDEN)
    w3, b3 = linear(k3, HIDDEN, output_size)
    return {"w1": w1, "b1": b1, "w2": w2, "b2": b2, "w3": w3, "b3": b3}


def pack_params(params, weight_dtype=None):
    """One-time packing for the kernel:
      * hidden dim zero-padded 64 -> 128 (full lane width),
      * W3 stored TRANSPOSED with the output dim padded to a multiple of 8
        sublanes (kernel writes a dense (out_pad, batch) slab),
      * b1/b2 packed into one (8, 128) f32 slab; b3 stored as an f32 column.
    weight_dtype=None auto-selects bf16 on v6e/v7x, f32 on v5e and older.
    Biases stay float32 (f32 epilogue)."""
    if weight_dtype is None:
        weight_dtype = _default_weight_dtype()

    w1, b1 = params["w1"], params["b1"]
    w2, b2 = params["w2"], params["b2"]
    w3, b3 = params["w3"], params["b3"]
    in_size = w1.shape[0]
    out_size = w3.shape[1]
    out_pad = _round_up(out_size, 8)

    w1p = jnp.zeros((in_size, HIDDEN_PAD), jnp.float32).at[:, :HIDDEN].set(w1)
    w2p = jnp.zeros((HIDDEN_PAD, HIDDEN_PAD), jnp.float32).at[:HIDDEN, :HIDDEN].set(w2)
    w3t = jnp.zeros((out_pad, HIDDEN_PAD), jnp.float32).at[:out_size, :HIDDEN].set(w3.T)

    b12 = (jnp.zeros((8, HIDDEN_PAD), jnp.float32)
           .at[0, :HIDDEN].set(b1[0])
           .at[1, :HIDDEN].set(b2[0]))
    b3t = jnp.zeros((out_pad, 1), jnp.float32).at[:out_size, :].set(b3.T)

    return {
        "w1": w1p.astype(weight_dtype),
        "w2": w2p.astype(weight_dtype),
        "w3t": w3t.astype(weight_dtype),
        "b12": b12,
        "b3t": b3t,
        "out_size": out_size,
        "out_pad": out_pad,
    }


def net_forward(x, packed, *, block_batch=2048, dimension_semantics=None):
    """Batch-tiled fused MLP: relu(relu(x@W1+b1)@W2+b2)@W3+b3.

    x:      (batch, input_size) float32
    packed: output of pack_params()
    Returns (batch, output_size) float32.
    """
    w1, w2, w3t = packed["w1"], packed["w2"], packed["w3t"]
    b12, b3t = packed["b12"], packed["b3t"]
    out_size, out_pad = packed["out_size"], packed["out_pad"]

    batch, in_size = x.shape

    # Batch tiling: big 128-aligned tiles for large batches (per-step overhead
    # dominates), one small 8-aligned tile for the tiny RL inference path.
    if batch <= 128:
        tb = _round_up(max(batch, 1), 8)
        n_steps = 1
    else:
        n_steps = -(-batch // block_batch)
        tb = _round_up(-(-batch // n_steps), 128)
    b_pad = tb * n_steps
    if b_pad != batch:
        x = jnp.pad(x, ((0, b_pad - batch), (0, 0)))

    resident = lambda i: (0, 0)   # grid-invariant -> VMEM-resident operands

    cost = pl.CostEstimate(
        flops=2 * b_pad * (in_size * HIDDEN_PAD
                           + HIDDEN_PAD * HIDDEN_PAD
                           + HIDDEN_PAD * out_pad),
        transcendentals=0,
        bytes_accessed=(int(x.size) * x.dtype.itemsize
                        + out_pad * b_pad * 4
                        + sum(int(a.size) * a.dtype.itemsize
                              for a in (w1, w2, w3t, b12, b3t))),
    )

    if dimension_semantics is None:
        dimension_semantics = _default_dim_semantics()

    out_t = pl.pallas_call(
        _mlp_kernel,
        out_shape=jax.ShapeDtypeStruct((out_pad, b_pad), jnp.float32),
        grid=(n_steps,),
        in_specs=[
            pl.BlockSpec((tb, in_size), lambda i: (i, 0)),        # x: pipelined over batch
            pl.BlockSpec((in_size, HIDDEN_PAD), resident),        # w1
            pl.BlockSpec((HIDDEN_PAD, HIDDEN_PAD), resident),     # w2
            pl.BlockSpec((out_pad, HIDDEN_PAD), resident),        # w3^T
            pl.BlockSpec((8, HIDDEN_PAD), resident),              # b1/b2 slab
            pl.BlockSpec((out_pad, 1), resident),                 # b3^T column
        ],
        out_specs=pl.BlockSpec((out_pad, tb), lambda i: (0, i)),  # lanes = batch
        compiler_params=pltpu.CompilerParams(
            dimension_semantics=dimension_semantics),
        cost_estimate=cost,
    )(x, w1, w2, w3t, b12, b3t)

    # Tiny (out_pad, b_pad) slab -> (batch, out_size).
    return out_t[:out_size, :batch].T


def _reference_forward(x, p):
    h1 = jnp.maximum(x @ p["w1"] + p["b1"], 0.0)
    h2 = jnp.maximum(h1 @ p["w2"] + p["b2"], 0.0)
    return h2 @ p["w3"] + p["b3"]


if __name__ == "__main__":
    input_size, output_size = 16, 4
    key = jax.random.PRNGKey(0)
    k_params, k_x1, k_x2, k_x3 = jax.random.split(key, 4)

    params = init_params(k_params, input_size, output_size)
    packed_f32 = pack_params(params, weight_dtype=jnp.float32)

    # --- small per-step RL batch (single small tile) ---
    x_small = jax.random.normal(k_x1, (8, input_size), dtype=jnp.float32)
    out_small = jax.block_until_ready(net_forward(x_small, packed_f32))
    ref_small = _reference_forward(x_small, params)
    assert out_small.shape == (8, output_size)
    assert jnp.allclose(out_small, ref_small, atol=1e-4, rtol=1e-4)

    # --- larger batch exercising the batch grid (3 tiles of 128 + padding) ---
    x_big = jax.random.normal(k_x2, (300, input_size), dtype=jnp.float32)
    out_big = jax.block_until_ready(net_forward(x_big, packed_f32, block_batch=128))
    ref_big = _reference_forward(x_big, params)
    assert out_big.shape == (300, output_size)
    assert jnp.allclose(out_big, ref_big, atol=1e-4, rtol=1e-4)

    # --- explicit bf16 MXU operands (v6e/v7x fast path), f32 accumulation ---
    packed_bf16 = pack_params(params, weight_dtype=jnp.bfloat16)
    out_bf16 = jax.block_until_ready(net_forward(x_big, packed_bf16, block_batch=128))
    assert out_bf16.shape == (300, output_size)
    assert jnp.allclose(out_bf16, ref_big, atol=5e-2, rtol=5e-2)

    # --- default path: auto weight dtype, big 128-aligned tiles, 2 grid steps ---
    packed_auto = pack_params(params)          # bf16 on v6e/v7x, f32 on v5e
    x_huge = jax.random.normal(k_x3, (2500, input_size), dtype=jnp.float32)
    out_huge = jax.block_until_ready(net_forward(x_huge, packed_auto))
    ref_huge = _reference_forward(x_huge, params)
    assert out_huge.shape == (2500, output_size)
    assert jnp.allclose(out_huge, ref_huge, atol=5e-2, rtol=5e-2)

    print("KERNEL_OK")
</pallas_src>

<mosaic_0001>
module attributes {stable_mosaic.version = 11 : i64} {
  func.func @_mlp_kernel(%arg0: i32, %arg1: memref<8x16xf32, #tpu.memory_space<vmem>>, %arg2: memref<16x128xf32, #tpu.memory_space<vmem>>, %arg3: memref<128x128xf32, #tpu.memory_space<vmem>>, %arg4: memref<8x128xf32, #tpu.memory_space<vmem>>, %arg5: memref<8x128xf32, #tpu.memory_space<vmem>>, %arg6: memref<8x1xf32, #tpu.memory_space<vmem>>, %arg7: memref<8x8xf32, #tpu.memory_space<vmem>>) attributes {dimension_semantics = [#tpu.dimension_semantics<parallel>], iteration_bounds = array<i64: 1>, scalar_prefetch = 0 : i64, scratch_operands = 0 : i64, tpu.core_type = #tpu.core_type<tc>, window_params = [{transform_indices = @transform_0, window_bounds = array<i64: 8, 16>}, {pipeline_mode = #tpu.pipeline_mode<synchronous>, transform_indices = @transform_1, window_bounds = array<i64: 16, 128>}, {pipeline_mode = #tpu.pipeline_mode<synchronous>, transform_indices = @transform_2, window_bounds = array<i64: 128, 128>}, {pipeline_mode = #tpu.pipeline_mode<synchronous>, transform_indices = @transform_3, window_bounds = array<i64: 8, 128>}, {pipeline_mode = #tpu.pipeline_mode<synchronous>, transform_indices = @transform_4, window_bounds = array<i64: 8, 128>}, {pipeline_mode = #tpu.pipeline_mode<synchronous>, transform_indices = @transform_5, window_bounds = array<i64: 8, 1>}, {transform_indices = @transform_6, window_bounds = array<i64: 8, 8>}]} {
    %c0 = arith.constant 0 : index
    %c0_0 = arith.constant 0 : index
    %0 = vector.load %arg1[%c0, %c0_0] : memref<8x16xf32, #tpu.memory_space<vmem>>, vector<8x16xf32>
    %c0_1 = arith.constant 0 : index
    %c0_2 = arith.constant 0 : index
    %1 = vector.load %arg5[%c0_1, %c0_2] : memref<8x128xf32, #tpu.memory_space<vmem>>, vector<8x128xf32>
    %2 = vector.extract_strided_slice %1 {offsets = [0, 0], sizes = [1, 128], strides = [1, 1]} : vector<8x128xf32> to vector<1x128xf32>
    %3 = vector.extract_strided_slice %1 {offsets = [1, 0], sizes = [1, 128], strides = [1, 1]} : vector<8x128xf32> to vector<1x128xf32>
    %c0_3 = arith.constant 0 : index
    %c0_4 = arith.constant 0 : index
    %4 = vector.load %arg2[%c0_3, %c0_4] : memref<16x128xf32, #tpu.memory_space<vmem>>, vector<16x128xf32>
    %cst = arith.constant dense<0.000000e+00> : vector<8x128xf32>
    %5 = tpu.matmul %0, %4, %cst {dimension_numbers = #tpu.dot_dimension_numbers<[1], [0], [0], [1], [0, 0, 1, 1], [], []>} : vector<8x16xf32>, vector<16x128xf32>, vector<8x128xf32> -> vector<8x128xf32>
    %6 = vector.broadcast %2 : vector<1x128xf32> to vector<8x128xf32>
    %7 = arith.addf %5, %6 : vector<8x128xf32>
    %cst_5 = arith.constant 0.000000e+00 : f32
    %8 = vector.broadcast %cst_5 : f32 to vector<8x128xf32>
    %9 = arith.maximumf %7, %8 : vector<8x128xf32>
    %c0_6 = arith.constant 0 : index
    %c0_7 = arith.constant 0 : index
    %10 = vector.load %arg3[%c0_6, %c0_7] : memref<128x128xf32, #tpu.memory_space<vmem>>, vector<128x128xf32>
    %cst_8 = arith.constant dense<0.000000e+00> : vector<8x128xf32>
    %11 = tpu.matmul %9, %10, %cst_8 {dimension_numbers = #tpu.dot_dimension_numbers<[1], [0], [0], [1], [0, 0, 1, 1], [], []>} : vector<8x128xf32>, vector<128x128xf32>, vector<8x128xf32> -> vector<8x128xf32>
    %12 = vector.broadcast %3 : vector<1x128xf32> to vector<8x128xf32>
    %13 = arith.addf %11, %12 : vector<8x128xf32>
    %cst_9 = arith.constant 0.000000e+00 : f32
    %14 = vector.broadcast %cst_9 : f32 to vector<8x128xf32>
    %15 = arith.maximumf %13, %14 : vector<8x128xf32>
    %c0_10 = arith.constant 0 : index
    %c0_11 = arith.constant 0 : index
    %16 = vector.load %arg4[%c0_10, %c0_11] : memref<8x128xf32, #tpu.memory_space<vmem>>, vector<8x128xf32>
    %17 = tpu.transpose %15, [1, 0] : vector<8x128xf32> -> vector<128x8xf32>
    %cst_12 = arith.constant dense<0.000000e+00> : vector<8x8xf32>
    %18 = tpu.matmul %16, %17, %cst_12 {dimension_numbers = #tpu.dot_dimension_numbers<[1], [0], [0], [1], [0, 0, 1, 1], [], []>} : vector<8x128xf32>, vector<128x8xf32>, vector<8x8xf32> -> vector<8x8xf32>
    %c0_13 = arith.constant 0 : index
    %c0_14 = arith.constant 0 : index
    %19 = vector.load %arg6[%c0_13, %c0_14] : memref<8x1xf32, #tpu.memory_space<vmem>>, vector<8x1xf32>
    %20 = vector.broadcast %19 : vector<8x1xf32> to vector<8x8xf32>
    %21 = arith.addf %18, %20 : vector<8x8xf32>
    %c0_15 = arith.constant 0 : index
    %c0_16 = arith.constant 0 : index
    %22 = vector.load %arg7[%c0_15, %c0_16] : memref<8x8xf32, #tpu.memory_space<vmem>>, vector<8x8xf32>
    tpu.vector_store %arg7[%c0_15, %c0_16], %21 {strides = array<i32>} : memref<8x8xf32, #tpu.memory_space<vmem>>, vector<8x8xf32>,
    return
  }
  func.func @transform_0(%arg0: i32) -> (i32, i32) {
    %c0_i32 = arith.constant 0 : i32
    %c0_i32_0 = arith.constant 0 : i32
    return %arg0, %c0_i32 : i32, i32
  }
  func.func @transform_1(%arg0: i32) -> (i32, i32) {
    %c0_i32 = arith.constant 0 : i32
    %c0_i32_0 = arith.constant 0 : i32
    %c0_i32_1 = arith.constant 0 : i32
    return %c0_i32, %c0_i32_0 : i32, i32
  }
  func.func @transform_2(%arg0: i32) -> (i32, i32) {
    %c0_i32 = arith.constant 0 : i32
    %c0_i32_0 = arith.constant 0 : i32
    %c0_i32_1 = arith.constant 0 : i32
    return %c0_i32, %c0_i32_0 : i32, i32
  }
  func.func @transform_3(%arg0: i32) -> (i32, i32) {
    %c0_i32 = arith.constant 0 : i32
    %c0_i32_0 = arith.constant 0 : i32
    %c0_i32_1 = arith.constant 0 : i32
    return %c0_i32, %c0_i32_0 : i32, i32
  }
  func.func @transform_4(%arg0: i32) -> (i32, i32) {
    %c0_i32 = arith.constant 0 : i32
    %c0_i32_0 = arith.constant 0 : i32
    %c0_i32_1 = arith.constant 0 : i32
    return %c0_i32, %c0_i32_0 : i32, i32
  }
  func.func @transform_5(%arg0: i32) -> (i32, i32) {
    %c0_i32 = arith.constant 0 : i32
    %c0_i32_0 = arith.constant 0 : i32
    %c0_i32_1 = arith.constant 0 : i32
    return %c0_i32, %c0_i32_0 : i32, i32
  }
  func.func @transform_6(%arg0: i32) -> (i32, i32) {
    %c0_i32 = arith.constant 0 : i32
    %c0_i32_0 = arith.constant 0 : i32
    return %c0_i32, %arg0 : i32, i32
  }
}

</mosaic_0001>

<llo_original>
// kernel: tpu_custom_call.1
$region0: #{tpu_custom_call.1}
  #allocation0 [shape = 'u32[]', space=smem, size = 0x4, offset = 0x4, fixed_abs, tag = 'smem constant byte address 0x4 - core index']
  #allocation1 [shape = 'u32[144,128]{1,0:T(1,128)}', space=vmem, size = 0x12000, scoped, tag = 'internal scratch']
  %s0 = inlined_call_operand.vmem [shape: f32[8,16], index: 0, kind: input, shape index: {}]
  %s1 = inlined_call_operand.hbm [shape: f32[16,128], index: 1, kind: input, shape index: {}]
  %s2 = inlined_call_operand.hbm [shape: f32[128,128], index: 2, kind: input, shape index: {}]
  %s3 = inlined_call_operand.hbm [shape: f32[8,128], index: 3, kind: input, shape index: {}]
  %s4 = inlined_call_operand.vmem [shape: f32[8,128], index: 4, kind: input, shape index: {}]
  %s5 = inlined_call_operand.vmem [shape: f32[8,1], index: 5, kind: input, shape index: {}]
  %s6 = inlined_call_operand.hbm [shape: f32[8,8], index: 6, kind: output, shape index: {}]
  %s7 = sld [smem:[#allocation0]]
  $region46: #{tpu_custom_call.1} parent=0
    _
  %s9 = ssub.s32 1, %s7
  %s10 = scalar_select 0, %s9, %s7
  $region1: #{tpu_custom_call.1} parent=0
    #allocation2 [shape = 'u8[8192]{0}', space=vmem, size = 0x2000, scoped, tag = 'input window, operand 1, single buffered']
    #allocation3 [shape = 's32[1]{0}', space=sflag, size = 0x4, scoped, tag = 'scoped memory for tpu_custom_call.1']
    #allocation4 [shape = 's32[1]{0}', space=sflag, size = 0x4, scoped, tag = 'scoped memory for tpu_custom_call.1']
    #allocation5 [shape = 'u8[65536]{0}', space=vmem, size = 0x10000, scoped, tag = 'input window, operand 2, single buffered']
    #allocation6 [shape = 's32[1]{0}', space=sflag, size = 0x4, scoped, tag = 'scoped memory for tpu_custom_call.1']
    #allocation7 [shape = 'u8[4096]{0}', space=vmem, size = 0x1000, scoped, tag = 'input window, operand 3, single buffered']
    #allocation8 [shape = 'u8[4096]{0}', space=vmem, size = 0x1000, scoped, tag = 'output window, operand 0, single buffered']
    %11 = vsyncpa [#allocation3], 0
    %12 = vsyncpa [#allocation6], 0
    %13 = vsyncpa [#allocation4], 0
    // Predicated region
    $region2: #{tpu_custom_call.1} parent=1 // pred_check
      _
    $region3: #{tpu_custom_call.1} parent=1 // pred_check_branch
      %15 = sbr.rel (0) target = $region5
    $region4: #{tpu_custom_call.1} parent=1 // pred_region
      _
    $region5: #{tpu_custom_call.1} parent=1 // pred_fallthru
      _
    // Predicated region
    $region6: #{tpu_custom_call.1} parent=1 // pred_check
      _
    $region7: #{tpu_custom_call.1} parent=1 // pred_check_branch
      %17 = sbr.rel (0) target = $region9
    $region8: #{tpu_custom_call.1} parent=1 // pred_region
      %s19 = ssub.s32 256, 256
      %20 = vsyncadd [#allocation3], %s19
      %s21 = sshll.u32 [#allocation2], 4
      %s22 = int_to_ptr.vmem [resolvable:$true] %s21
      %27 = dma.hbm_to_vmem [thread:$0]  %s1, 256, %s22, [#allocation3], 128, 128, 8
    $region9: #{tpu_custom_call.1} parent=1 // pred_fallthru
      _
    // Predicated region
    $region10: #{tpu_custom_call.1} parent=1 // pred_check
      _
    $region11: #{tpu_custom_call.1} parent=1 // pred_check_branch
      %29 = sbr.rel (0) target = $region13
    $region12: #{tpu_custom_call.1} parent=1 // pred_region
      %s31 = ssub.s32 2048, 2048
      %32 = vsyncadd [#allocation6], %s31
      %s33 = sshll.u32 [#allocation5], 4
      %s34 = int_to_ptr.vmem [resolvable:$true] %s33
      %39 = dma.hbm_to_vmem [thread:$0]  %s2, 2048, %s34, [#allocation6], 128, 128, 8
    $region13: #{tpu_custom_call.1} parent=1 // pred_fallthru
      _
    // Predicated region
    $region14: #{tpu_custom_call.1} parent=1 // pred_check
      _
    $region15: #{tpu_custom_call.1} parent=1 // pred_check_branch
      %41 = sbr.rel (0) target = $region17
    $region16: #{tpu_custom_call.1} parent=1 // pred_region
      %s43 = ssub.s32 128, 128
      %44 = vsyncadd [#allocation6], %s43
      %s46 = sshll.u32 [#allocation7], 4
      %s47 = int_to_ptr.vmem [resolvable:$true] %s46
      %49 = dma.hbm_to_vmem [thread:$0]  %s3, 128, %s47, [#allocation6]
    $region17: #{tpu_custom_call.1} parent=1 // pred_fallthru
      _
    // Predicated region
    $region18: #{tpu_custom_call.1} parent=1 // pred_check
      _
    $region19: #{tpu_custom_call.1} parent=1 // pred_check_branch
      %51 = sbr.rel (0) target = $region21
    $region20: #{tpu_custom_call.1} parent=1 // pred_region
      _
    $region21: #{tpu_custom_call.1} parent=1 // pred_fallthru
      _
    // Predicated region
    $region22: #{tpu_custom_call.1} parent=1 // pred_check
      _
    $region23: #{tpu_custom_call.1} parent=1 // pred_check_branch
      %53 = sbr.rel (0) target = $region25
    $region24: #{tpu_custom_call.1} parent=1 // pred_region
      _
    $region25: #{tpu_custom_call.1} parent=1 // pred_fallthru
      _
    // Predicated region
    $region26: #{tpu_custom_call.1} parent=1 // pred_check
      _
    $region27: #{tpu_custom_call.1} parent=1 // pred_check_branch
      %55 = sbr.rel (0) target = $region29
    $region28: #{tpu_custom_call.1} parent=1 // pred_region
      %56 = dma.done [#allocation3], 256
    $region29: #{tpu_custom_call.1} parent=1 // pred_fallthru
      _
    // Predicated region
    $region30: #{tpu_custom_call.1} parent=1 // pred_check
      _
    $region31: #{tpu_custom_call.1} parent=1 // pred_check_branch
      %58 = sbr.rel (0) target = $region33
    $region32: #{tpu_custom_call.1} parent=1 // pred_region
      %59 = dma.done [#allocation6], 2048
    $region33: #{tpu_custom_call.1} parent=1 // pred_fallthru
      _
    // Predicated region
    $region34: #{tpu_custom_call.1} parent=1 // pred_check
      _
    $region35: #{tpu_custom_call.1} parent=1 // pred_check_branch
      %61 = sbr.rel (0) target = $region37
    $region36: #{tpu_custom_call.1} parent=1 // pred_region
      %62 = dma.done [#allocation6], 128
    $region37: #{tpu_custom_call.1} parent=1 // pred_fallthru
      _
    %v63 = vld [vmem:[%s0] sm:$0xff]
    %v64 = vld [vmem:[%s4] sm:$0xff]
    %v65 = vld [vmem:[#allocation2] sm:$0xff]
    %v66 = vld [vmem:[#allocation2 + $0x8] sm:$0xff]
    %v67 = vlaneseq
    %v68 = vshrl.u32 %v67, 7
    %v69 = vsub.s32 0, %v68
    %v70 = vrot.slane %v64, %v69
    %vm71 = vcmask 130048
    %v73 = vsel %vm71, %v63, 0
    %75 = vmatprep.subr.mxu0 0.0
    %76 = vmatpush1.msra.mxu0 0.0
    %77 = vmatprep.subr.mxu0 0.0
    %78 = vmatpush1.msra.mxu0 0.0
    %79 = vmatprep.subr.mxu0 0.0
    %80 = vmatpush1.msra.mxu0 0.0
    %81 = vmatprep.subr.mxu0 0.0
    %82 = vmatpush1.msra.mxu0 0.0
    %83 = vmatprep.subr.mxu0 0.0
    %84 = vmatpush1.msra.mxu0 0.0
    %85 = vmatprep.subr.mxu0 0.0
    %86 = vmatpush1.msra.mxu0 0.0
    %87 = vmatprep.subr.mxu0 0.0
    %88 = vmatpush1.msra.mxu0 0.0
    %89 = vmatprep.subr.mxu0 0.0
    %90 = vmatpush1.msra.mxu0 0.0
    %91 = vmatprep.subr.mxu0 0.0
    %92 = vmatpush1.msra.mxu0 0.0
    %93 = vmatprep.subr.mxu0 0.0
    %94 = vmatpush1.msra.mxu0 0.0
    %95 = vmatprep.subr.mxu0 0.0
    %96 = vmatpush1.msra.mxu0 0.0
    %97 = vmatprep.subr.mxu0 0.0
    %98 = vmatpush1.msra.mxu0 0.0
    %99 = vmatprep.subr.mxu0 0.0
    %100 = vmatpush1.msra.mxu0 0.0
    %101 = vmatprep.subr.mxu0 0.0
    %102 = vmatpush1.msra.mxu0 0.0
    %103 = vmatprep.subr.mxu0 0.0
    %104 = vmatpush1.msra.mxu0 %v66
    %105 = vmatprep.subr.mxu0 0.0
    %106 = vmatpush1.msra.mxu0 %v65
    %107 = vmatprep.subr.mxu0 0.0
    %108 = vmatpush2.msra.mxu0 0.0
    %109 = vmatprep.subr.mxu0 0.0
    %110 = vmatpush2.msra.mxu0 0.0
    %111 = vmatprep.subr.mxu0 0.0
    %112 = vmatpush2.msra.mxu0 0.0
    %113 = vmatprep.subr.mxu0 0.0
    %114 = vmatpush2.msra.mxu0 0.0
    %115 = vmatprep.subr.mxu0 0.0
    %116 = vmatpush2.msra.mxu0 0.0
    %117 = vmatprep.subr.mxu0 0.0
    %118 = vmatpush2.msra.mxu0 0.0
    %119 = vmatprep.subr.mxu0 0.0
    %120 = vmatpush2.msra.mxu0 0.0
    %121 = vmatprep.subr.mxu0 0.0
    %122 = vmatpush2.msra.mxu0 0.0
    %123 = vmatprep.subr.mxu0 0.0
    %124 = vmatpush2.msra.mxu0 0.0
    %125 = vmatprep.subr.mxu0 0.0
    %126 = vmatpush2.msra.mxu0 0.0
    %127 = vmatprep.subr.mxu0 0.0
    %128 = vmatpush2.msra.mxu0 0.0
    %129 = vmatprep.subr.mxu0 0.0
    %130 = vmatpush2.msra.mxu0 0.0
    %131 = vmatprep.subr.mxu0 0.0
    %132 = vmatpush2.msra.mxu0 0.0
    %133 = vmatprep.subr.mxu0 0.0
    %134 = vmatpush2.msra.mxu0 0.0
    %135 = vmatprep.subr.mxu0 0.0
    %136 = vmatpush2.msra.mxu0 0.0
    %137 = vmatprep.subr.mxu0 0.0
    %138 = vmatpush2.msra.mxu0 0.0
    %139 = vmatprep.mubr.f32.mxu0 0.0
    %140 = vmatmul.mubr.f32.gmra.mxu0 %v73
    %v141 = vpop.f32.mrf.mxu0
    %v142 = vadd.f32 %v70, %v141
    %v143 = vpop.f32.mrf.mxu0
    %144 = vdwg.mxu0
    %v145 = vmax.f32 %v142, 0.0
    %v146 = vld [vmem:[#allocation5] sm:$0xff]
    %v147 = vld [vmem:[#allocation5 + $0x8] sm:$0xff]
    %v148 = vld [vmem:[#allocation5 + $0x10] sm:$0xff]
    %v149 = vld [vmem:[#allocation5 + $0x18] sm:$0xff]
    %v150 = vld [vmem:[#allocation5 + $0x20] sm:$0xff]
    %v151 = vld [vmem:[#allocation5 + $0x28] sm:$0xff]
    %v152 = vld [vmem:[#allocation5 + $0x30] sm:$0xff]
    %v153 = vld [vmem:[#allocation5 + $0x38] sm:$0xff]
    %v154 = vld [vmem:[#allocation5 + $0x40] sm:$0xff]
    %v155 = vld [vmem:[#allocation5 + $0x48] sm:$0xff]
    %v156 = vld [vmem:[#allocation5 + $0x50] sm:$0xff]
    %v157 = vld [vmem:[#allocation5 + $0x58] sm:$0xff]
    %v158 = vld [vmem:[#allocation5 + $0x60] sm:$0xff]
    %v159 = vld [vmem:[#allocation5 + $0x68] sm:$0xff]
    %v160 = vld [vmem:[#allocation5 + $0x70] sm:$0xff]
    %v161 = vld [vmem:[#allocation5 + $0x78] sm:$0xff]
    %v162 = vlaneseq
    %v163 = vshrl.u32 %v162, 7
    %v164 = vsub.s32 1, %v163
    %v165 = vrot.slane %v64, %v164
    %166 = vmatprep.subr.mxu0 0.0
    %167 = vmatpush1.msra.mxu0 %v161
    %168 = vmatprep.subr.mxu0 0.0
    %169 = vmatpush1.msra.mxu0 %v160
    %170 = vmatprep.subr.mxu0 0.0
    %171 = vmatpush1.msra.mxu0 %v159
    %172 = vmatprep.subr.mxu0 0.0
    %173 = vmatpush1.msra.mxu0 %v158
    %174 = vmatprep.subr.mxu0 0.0
    %175 = vmatpush1.msra.mxu0 %v157
    %176 = vmatprep.subr.mxu0 0.0
    %177 = vmatpush1.msra.mxu0 %v156
    %178 = vmatprep.subr.mxu0 0.0
    %179 = vmatpush1.msra.mxu0 %v155
    %180 = vmatprep.subr.mxu0 0.0
    %181 = vmatpush1.msra.mxu0 %v154
    %182 = vmatprep.subr.mxu0 0.0
    %183 = vmatpush1.msra.mxu0 %v153
    %184 = vmatprep.subr.mxu0 0.0
    %185 = vmatpush1.msra.mxu0 %v152
    %186 = vmatprep.subr.mxu0 0.0
    %187 = vmatpush1.msra.mxu0 %v151
    %188 = vmatprep.subr.mxu0 0.0
    %189 = vmatpush1.msra.mxu0 %v150
    %190 = vmatprep.subr.mxu0 0.0
    %191 = vmatpush1.msra.mxu0 %v149
    %192 = vmatprep.subr.mxu0 0.0
    %193 = vmatpush1.msra.mxu0 %v148
    %194 = vmatprep.subr.mxu0 0.0
    %195 = vmatpush1.msra.mxu0 %v147
    %196 = vmatprep.subr.mxu0 0.0
    %197 = vmatpush1.msra.mxu0 %v146
    %198 = vmatprep.subr.mxu0 0.0
    %199 = vmatpush2.msra.mxu0 0.0
    %200 = vmatprep.subr.mxu0 0.0
    %201 = vmatpush2.msra.mxu0 0.0
    %202 = vmatprep.subr.mxu0 0.0
    %203 = vmatpush2.msra.mxu0 0.0
    %204 = vmatprep.subr.mxu0 0.0
    %205 = vmatpush2.msra.mxu0 0.0
    %206 = vmatprep.subr.mxu0 0.0
    %207 = vmatpush2.msra.mxu0 0.0
    %208 = vmatprep.subr.mxu0 0.0
    %209 = vmatpush2.msra.mxu0 0.0
    %210 = vmatprep.subr.mxu0 0.0
    %211 = vmatpush2.msra.mxu0 0.0
    %212 = vmatprep.subr.mxu0 0.0
    %213 = vmatpush2.msra.mxu0 0.0
    %214 = vmatprep.subr.mxu0 0.0
    %215 = vmatpush2.msra.mxu0 0.0
    %216 = vmatprep.subr.mxu0 0.0
    %217 = vmatpush2.msra.mxu0 0.0
    %218 = vmatprep.subr.mxu0 0.0
    %219 = vmatpush2.msra.mxu0 0.0
    %220 = vmatprep.subr.mxu0 0.0
    %221 = vmatpush2.msra.mxu0 0.0
    %222 = vmatprep.subr.mxu0 0.0
    %223 = vmatpush2.msra.mxu0 0.0
    %224 = vmatprep.subr.mxu0 0.0
    %225 = vmatpush2.msra.mxu0 0.0
    %226 = vmatprep.subr.mxu0 0.0
    %227 = vmatpush2.msra.mxu0 0.0
    %228 = vmatprep.subr.mxu0 0.0
    %229 = vmatpush2.msra.mxu0 0.0
    %230 = vmatprep.mubr.f32.mxu0 0.0
    %231 = vmatmul.mubr.f32.gmra.mxu0 %v145
    %v232 = vpop.f32.mrf.mxu0
    %v233 = vadd.f32 %v165, %v232
    %v234 = vpop.f32.mrf.mxu0
    %235 = vdwg.mxu0
    %v236 = vmax.f32 %v233, 0.0
    %v237 = vld [vmem:[#allocation7] sm:$0xff]
    %v238 = vld [vmem:[%s5] sm:$0xff]
    %240 = vset.pattern.permute.xlu0 0
    %241 = vperm.xlu0 %240, %v238
    %v242 = vpop.permute.xlu0 %241
    %244 = vmatprep.subr.mxu0 0.0
    %245 = vmatpush1.xpose.msra.mxu0 0.0
    %246 = vmatprep.subr.mxu0 0.0
    %247 = vmatpush1.xpose.msra.mxu0 0.0
    %248 = vmatprep.subr.mxu0 0.0
    %249 = vmatpush1.xpose.msra.mxu0 0.0
    %250 = vmatprep.subr.mxu0 0.0
    %251 = vmatpush1.xpose.msra.mxu0 0.0
    %252 = vmatprep.subr.mxu0 0.0
    %253 = vmatpush1.xpose.msra.mxu0 0.0
    %254 = vmatprep.subr.mxu0 0.0
    %255 = vmatpush1.xpose.msra.mxu0 0.0
    %256 = vmatprep.subr.mxu0 0.0
    %257 = vmatpush1.xpose.msra.mxu0 0.0
    %258 = vmatprep.subr.mxu0 0.0
    %259 = vmatpush1.xpose.msra.mxu0 0.0
    %260 = vmatprep.subr.mxu0 0.0
    %261 = vmatpush1.xpose.msra.mxu0 0.0
    %262 = vmatprep.subr.mxu0 0.0
    %263 = vmatpush1.xpose.msra.mxu0 0.0
    %264 = vmatprep.subr.mxu0 0.0
    %265 = vmatpush1.xpose.msra.mxu0 0.0
    %266 = vmatprep.subr.mxu0 0.0
    %267 = vmatpush1.xpose.msra.mxu0 0.0
    %268 = vmatprep.subr.mxu0 0.0
    %269 = vmatpush1.xpose.msra.mxu0 0.0
    %270 = vmatprep.subr.mxu0 0.0
    %271 = vmatpush1.xpose.msra.mxu0 0.0
    %272 = vmatprep.subr.mxu0 0.0
    %273 = vmatpush1.xpose.msra.mxu0 0.0
    %274 = vmatprep.subr.mxu0 0.0
    %275 = vmatpush1.xpose.msra.mxu0 %v236
    %276 = vmatprep.subr.mxu0 0.0
    %277 = vmatpush2.xpose.msra.mxu0 0.0
    %278 = vmatprep.subr.mxu0 0.0
    %279 = vmatpush2.xpose.msra.mxu0 0.0
    %280 = vmatprep.subr.mxu0 0.0
    %281 = vmatpush2.xpose.msra.mxu0 0.0
    %282 = vmatprep.subr.mxu0 0.0
    %283 = vmatpush2.xpose.msra.mxu0 0.0
    %284 = vmatprep.subr.mxu0 0.0
    %285 = vmatpush2.xpose.msra.mxu0 0.0
    %286 = vmatprep.subr.mxu0 0.0
    %287 = vmatpush2.xpose.msra.mxu0 0.0
    %288 = vmatprep.subr.mxu0 0.0
    %289 = vmatpush2.xpose.msra.mxu0 0.0
    %290 = vmatprep.subr.mxu0 0.0
    %291 = vmatpush2.xpose.msra.mxu0 0.0
    %292 = vmatprep.subr.mxu0 0.0
    %293 = vmatpush2.xpose.msra.mxu0 0.0
    %294 = vmatprep.subr.mxu0 0.0
    %295 = vmatpush2.xpose.msra.mxu0 0.0
    %296 = vmatprep.subr.mxu0 0.0
    %297 = vmatpush2.xpose.msra.mxu0 0.0
    %298 = vmatprep.subr.mxu0 0.0
    %299 = vmatpush2.xpose.msra.mxu0 0.0
    %300 = vmatprep.subr.mxu0 0.0
    %301 = vmatpush2.xpose.msra.mxu0 0.0
    %302 = vmatprep.subr.mxu0 0.0
    %303 = vmatpush2.xpose.msra.mxu0 0.0
    %304 = vmatprep.subr.mxu0 0.0
    %305 = vmatpush2.xpose.msra.mxu0 0.0
    %306 = vmatprep.subr.mxu0 0.0
    %307 = vmatpush2.xpose.msra.mxu0 0.0
    %308 = vmatprep.mubr.f32.mxu0 0.0
    %309 = vmatmul.mubr.f32.gmra.mxu0 %v237
    %v310 = vpop.f32.mrf.mxu0
    %v311 = vadd.f32 %v242, %v310
    %v312 = vpop.f32.mrf.mxu0
    %313 = vdwg.mxu0
    %vm314 = vcmask 64512
    %315 = vst.msk [vmem:[#allocation8] sm:$0xff] %vm314, %v311
    // Predicated region
    $region38: #{tpu_custom_call.1} parent=1 // pred_check
      _
    $region39: #{tpu_custom_call.1} parent=1 // pred_check_branch
      %317 = sbr.rel (0) target = $region41
    $region40: #{tpu_custom_call.1} parent=1 // pred_region
      %s319 = ssub.s32 128, 128
      %320 = vsyncadd [#allocation4], %s319
      %s322 = sshll.u32 [#allocation8], 4
      %s323 = int_to_ptr.vmem [resolvable:$true] %s322
      %325 = dma.vmem_to_hbm [thread:$0]  %s323, 128, %s6, [#allocation4]
    $region41: #{tpu_custom_call.1} parent=1 // pred_fallthru
      _
    // Predicated region
    $region42: #{tpu_custom_call.1} parent=1 // pred_check
      _
    $region43: #{tpu_custom_call.1} parent=1 // pred_check_branch
      %327 = sbr.rel (0) target = $region45
    $region44: #{tpu_custom_call.1} parent=1 // pred_region
      %328 = dma.done [#allocation4], 128
    $region45: #{tpu_custom_call.1} parent=1 // pred_fallthru
      _
    %329 = vsyncpa [#allocation3], 1
    %330 = vsyncpa [#allocation6], 1
    %331 = vsyncpa [#allocation4], 1

</llo_original>
